<compile_context>
chip_gen: v7x
topology: tpu7x:2x2x1
jax: 0.10.0
libtpu: 0.0.40
codegen_flags: <defaults>
</compile_context>

<pallas_src>
import functools

import jax
import jax.numpy as jnp
from jax.experimental import pallas as pl
from jax.experimental.pallas import tpu as pltpu


def _layer_norm_f32(res, gamma, beta, eps):
    """LayerNorm over the last dim, f32 accumulation, biased variance (matches nn.LayerNorm)."""
    mean = jnp.mean(res, axis=-1, keepdims=True)
    centered = res - mean
    var = jnp.mean(centered * centered, axis=-1, keepdims=True)
    inv = jax.lax.rsqrt(var + jnp.float32(eps))
    return centered * inv * gamma + beta


def _add_ln_kernel(x_ref, sub_ref, gamma_ref, beta_ref, o_ref, *, eps):
    """Fused residual-add + LayerNorm (no dropout / eval path)."""
    res = sub_ref[...].astype(jnp.float32) + x_ref[...].astype(jnp.float32)
    y = _layer_norm_f32(res, gamma_ref[...].astype(jnp.float32),
                        beta_ref[...].astype(jnp.float32), eps)
    o_ref[...] = y.astype(o_ref.dtype)


def _add_ln_dropout_kernel(bits_ref, x_ref, sub_ref, gamma_ref, beta_ref, o_ref, *,
                           drop_prob, eps):
    """Fused dropout(sublayer) + x + LayerNorm.

    bits_ref  : VMEM (T, F) uint32 -- per-element random bits (generated outside the kernel)
    x_ref     : VMEM (T, F)        -- residual input tile
    sub_ref   : VMEM (T, F)        -- sublayer output tile
    gamma_ref : VMEM (1, F)        -- LayerNorm weight
    beta_ref  : VMEM (1, F)        -- LayerNorm bias
    o_ref     : VMEM (T, F)        -- output tile
    """
    sub = sub_ref[...].astype(jnp.float32)

    # Integer-threshold dropout: drop iff bits < p * 2^32.  Pure VPU compare + select,
    # no shift / float-convert.  Survivors are scaled by 1/(1-p) (train-mode nn.Dropout).
    # NOTE: mask statistics match nn.Dropout but bits do not match PyTorch's RNG bit-for-bit.
    threshold = jnp.uint32(min(int(round(drop_prob * (2 ** 32))), 2 ** 32 - 1))
    keep = bits_ref[...] >= threshold
    sub = jnp.where(keep, sub * jnp.float32(1.0 / (1.0 - drop_prob)), 0.0)

    res = sub + x_ref[...].astype(jnp.float32)
    y = _layer_norm_f32(res, gamma_ref[...].astype(jnp.float32),
                        beta_ref[...].astype(jnp.float32), eps)
    o_ref[...] = y.astype(o_ref.dtype)


def _choose_tile_n(n_rows, features, itemsize, with_dropout,
                   vmem_budget_bytes=28 * 1024 * 1024):
    """Largest row tile (multiple of 8) whose double-buffered streams fit the VMEM budget.

    Budget is sized so the same choice is safe on v5e/v6e (128 MiB VMEM) and v7x (64 MiB).
    """
    # double-buffered streams: x, sublayer, out (input dtype) + uint32 bits if dropout
    per_row = features * (3 * itemsize + (4 if with_dropout else 0)) * 2
    # fp32 working temporaries inside the kernel body (res / centered / output)
    per_row += features * 4 * 4
    tile = max(8, vmem_budget_bytes // max(per_row, 1))
    tile = min(tile, 2048)
    tile = (tile // 8) * 8
    if n_rows <= tile:
        return n_rows        # single full block (allowed even if not a multiple of 8)
    return tile


def add_and_layer_norm(x, sublayer, gamma, beta, *, drop_prob=0.0, eps=1e-5,
                       key=None, training=True):
    """x, sublayer: (B, S, F); gamma, beta: (F,). Returns (B, S, F)."""
    B, S, F = x.shape
    N = B * S
    x2 = x.reshape(N, F)
    s2 = sublayer.reshape(N, F)
    g2 = gamma.reshape(1, F)
    b2 = beta.reshape(1, F)

    use_dropout = bool(training) and float(drop_prob) > 0.0
    itemsize = jnp.dtype(x.dtype).itemsize
    tile_n = _choose_tile_n(N, F, itemsize, use_dropout)
    grid = (pl.cdiv(N, tile_n),)

    row_spec = pl.BlockSpec((tile_n, F), lambda i: (i, 0))
    vec_spec = pl.BlockSpec((1, F), lambda i: (0, 0))

    bytes_accessed = 3 * N * F * itemsize + 2 * F * itemsize
    if use_dropout:
        bytes_accessed += 4 * N * F
    cost = pl.CostEstimate(flops=10 * N * F, transcendentals=N,
                           bytes_accessed=bytes_accessed)

    cparams = pltpu.CompilerParams(
        dimension_semantics=("parallel",),          # v7x: shard rows across both TCs
        vmem_limit_bytes=48 * 1024 * 1024,          # above 16/32 MiB scoped defaults, < v7x phys
    )

    if use_dropout:
        if key is None:
            key = jax.random.PRNGKey(0)
        bits = jax.random.bits(key, (N, F), dtype=jnp.uint32)
        kernel = functools.partial(_add_ln_dropout_kernel,
                                   drop_prob=float(drop_prob), eps=float(eps))
        in_specs = [row_spec, row_spec, row_spec, vec_spec, vec_spec]
        args = (bits, x2, s2, g2, b2)
    else:
        kernel = functools.partial(_add_ln_kernel, eps=float(eps))
        in_specs = [row_spec, row_spec, vec_spec, vec_spec]
        args = (x2, s2, g2, b2)

    out = pl.pallas_call(
        kernel,
        out_shape=jax.ShapeDtypeStruct((N, F), x.dtype),
        grid=grid,
        in_specs=in_specs,
        out_specs=row_spec,
        compiler_params=cparams,
        cost_estimate=cost,
    )(*args)
    return out.reshape(B, S, F)


if __name__ == "__main__":
    # Shapes implied by the module: batch=2, seq=8, hidden(features)=32
    B, S, F = 2, 8, 32
    drop_prob = 0.1
    eps = 1e-5

    key = jax.random.PRNGKey(0)
    kx, ks, kd = jax.random.split(key, 3)
    x = jax.random.normal(kx, (B, S, F), dtype=jnp.float32)
    sublayer = jax.random.normal(ks, (B, S, F), dtype=jnp.float32)

    # nn.LayerNorm(features) default init: weight = ones, bias = zeros
    gamma = jnp.ones((F,), dtype=jnp.float32)
    beta = jnp.zeros((F,), dtype=jnp.float32)

    # Eval path (no dropout): check against a pure-JAX reference.
    out_eval = add_and_layer_norm(x, sublayer, gamma, beta,
                                  drop_prob=drop_prob, eps=eps, training=False)
    out_eval = jax.block_until_ready(out_eval)
    res = (x + sublayer).astype(jnp.float32)
    mean = jnp.mean(res, axis=-1, keepdims=True)
    var = jnp.mean((res - mean) ** 2, axis=-1, keepdims=True)
    ref = (res - mean) * jax.lax.rsqrt(var + eps) * gamma + beta
    assert jnp.max(jnp.abs(out_eval - ref)) < 1e-4

    # Train path (dropout active).
    out_train = add_and_layer_norm(x, sublayer, gamma, beta,
                                   drop_prob=drop_prob, eps=eps, key=kd, training=True)
    out_train = jax.block_until_ready(out_train)
    assert out_train.shape == (B, S, F)
    assert bool(jnp.all(jnp.isfinite(out_train)))

    print("KERNEL_OK")
</pallas_src>

<mosaic_0001>
module attributes {stable_mosaic.version = 11 : i64} {
  func.func @_add_ln_kernel(%arg0: i32, %arg1: memref<16x32xf32, #tpu.memory_space<vmem>>, %arg2: memref<16x32xf32, #tpu.memory_space<vmem>>, %arg3: memref<1x32xf32, #tpu.memory_space<vmem>>, %arg4: memref<1x32xf32, #tpu.memory_space<vmem>>, %arg5: memref<16x32xf32, #tpu.memory_space<vmem>>) attributes {dimension_semantics = [#tpu.dimension_semantics<parallel>], iteration_bounds = array<i64: 1>, scalar_prefetch = 0 : i64, scratch_operands = 0 : i64, tpu.core_type = #tpu.core_type<tc>, window_params = [{transform_indices = @transform_0, window_bounds = array<i64: 16, 32>}, {transform_indices = @transform_1, window_bounds = array<i64: 16, 32>}, {pipeline_mode = #tpu.pipeline_mode<synchronous>, transform_indices = @transform_2, window_bounds = array<i64: 1, 32>}, {pipeline_mode = #tpu.pipeline_mode<synchronous>, transform_indices = @transform_3, window_bounds = array<i64: 1, 32>}, {transform_indices = @transform_4, window_bounds = array<i64: 16, 32>}]} {
    %c0 = arith.constant 0 : index
    %c0_0 = arith.constant 0 : index
    %0 = vector.load %arg2[%c0, %c0_0] : memref<16x32xf32, #tpu.memory_space<vmem>>, vector<16x32xf32>
    %c0_1 = arith.constant 0 : index
    %c0_2 = arith.constant 0 : index
    %1 = vector.load %arg1[%c0_1, %c0_2] : memref<16x32xf32, #tpu.memory_space<vmem>>, vector<16x32xf32>
    %2 = arith.addf %0, %1 : vector<16x32xf32>
    %c0_3 = arith.constant 0 : index
    %c0_4 = arith.constant 0 : index
    %3 = vector.load %arg3[%c0_3, %c0_4] : memref<1x32xf32, #tpu.memory_space<vmem>>, vector<1x32xf32>
    %c0_5 = arith.constant 0 : index
    %c0_6 = arith.constant 0 : index
    %4 = vector.load %arg4[%c0_5, %c0_6] : memref<1x32xf32, #tpu.memory_space<vmem>>, vector<1x32xf32>
    %cst = arith.constant dense<0.000000e+00> : vector<16xf32>
    %5 = vector.multi_reduction <add>, %2, %cst [1] : vector<16x32xf32> to vector<16xf32>
    %6 = vector.shape_cast %5 : vector<16xf32> to vector<16x1xf32>
    %cst_7 = arith.constant 3.200000e+01 : f32
    %7 = vector.broadcast %cst_7 : f32 to vector<16x1xf32>
    %8 = arith.divf %6, %7 : vector<16x1xf32>
    %9 = vector.broadcast %8 : vector<16x1xf32> to vector<16x32xf32>
    %10 = arith.subf %2, %9 : vector<16x32xf32>
    %11 = arith.mulf %10, %10 : vector<16x32xf32>
    %cst_8 = arith.constant dense<0.000000e+00> : vector<16xf32>
    %12 = vector.multi_reduction <add>, %11, %cst_8 [1] : vector<16x32xf32> to vector<16xf32>
    %13 = vector.shape_cast %12 : vector<16xf32> to vector<16x1xf32>
    %cst_9 = arith.constant 3.200000e+01 : f32
    %14 = vector.broadcast %cst_9 : f32 to vector<16x1xf32>
    %15 = arith.divf %13, %14 : vector<16x1xf32>
    %cst_10 = arith.constant 9.99999974E-6 : f32
    %16 = vector.broadcast %cst_10 : f32 to vector<16x1xf32>
    %17 = arith.addf %15, %16 : vector<16x1xf32>
    %18 = math.rsqrt %17 : vector<16x1xf32>
    %19 = vector.broadcast %18 : vector<16x1xf32> to vector<16x32xf32>
    %20 = arith.mulf %10, %19 : vector<16x32xf32>
    %21 = vector.broadcast %3 : vector<1x32xf32> to vector<16x32xf32>
    %22 = arith.mulf %20, %21 : vector<16x32xf32>
    %23 = vector.broadcast %4 : vector<1x32xf32> to vector<16x32xf32>
    %24 = arith.addf %22, %23 : vector<16x32xf32>
    %c0_11 = arith.constant 0 : index
    %c0_12 = arith.constant 0 : index
    %25 = vector.load %arg5[%c0_11, %c0_12] : memref<16x32xf32, #tpu.memory_space<vmem>>, vector<16x32xf32>
    tpu.vector_store %arg5[%c0_11, %c0_12], %24 {strides = array<i32>} : memref<16x32xf32, #tpu.memory_space<vmem>>, vector<16x32xf32>,
    return
  }
  func.func @transform_0(%arg0: i32) -> (i32, i32) {
    %c0_i32 = arith.constant 0 : i32
    %c0_i32_0 = arith.constant 0 : i32
    return %arg0, %c0_i32 : i32, i32
  }
  func.func @transform_1(%arg0: i32) -> (i32, i32) {
    %c0_i32 = arith.constant 0 : i32
    %c0_i32_0 = arith.constant 0 : i32
    return %arg0, %c0_i32 : i32, i32
  }
  func.func @transform_2(%arg0: i32) -> (i32, i32) {
    %c0_i32 = arith.constant 0 : i32
    %c0_i32_0 = arith.constant 0 : i32
    %c0_i32_1 = arith.constant 0 : i32
    return %c0_i32, %c0_i32_0 : i32, i32
  }
  func.func @transform_3(%arg0: i32) -> (i32, i32) {
    %c0_i32 = arith.constant 0 : i32
    %c0_i32_0 = arith.constant 0 : i32
    %c0_i32_1 = arith.constant 0 : i32
    return %c0_i32, %c0_i32_0 : i32, i32
  }
  func.func @transform_4(%arg0: i32) -> (i32, i32) {
    %c0_i32 = arith.constant 0 : i32
    %c0_i32_0 = arith.constant 0 : i32
    return %arg0, %c0_i32 : i32, i32
  }
}

</mosaic_0001>

<llo_original>
// kernel: tpu_custom_call.1
$region0: #{tpu_custom_call.1}
  #allocation0 [shape = 'u32[]', space=smem, size = 0x4, offset = 0x4, fixed_abs, tag = 'smem constant byte address 0x4 - core index']
  #allocation1 [shape = 'u32[144,128]{1,0:T(1,128)}', space=vmem, size = 0x12000, scoped, tag = 'internal scratch']
  %s0 = inlined_call_operand.hbm [shape: f32[16,32], index: 0, kind: input, shape index: {}]
  %s1 = inlined_call_operand.hbm [shape: f32[16,32], index: 1, kind: input, shape index: {}]
  %s2 = inlined_call_operand.vmem [shape: f32[1,32], index: 2, kind: input, shape index: {}]
  %s3 = inlined_call_operand.vmem [shape: f32[1,32], index: 3, kind: input, shape index: {}]
  %s4 = inlined_call_operand.hbm [shape: f32[16,32], index: 4, kind: output, shape index: {}]
  %s5 = sld [smem:[#allocation0]]
  $region34: #{tpu_custom_call.1} parent=0
    _
  %s7 = ssub.s32 1, %s5
  %s8 = scalar_select 0, %s7, %s5
  $region1: #{tpu_custom_call.1} parent=0
    #allocation2 [shape = 'u8[8192]{0}', space=vmem, size = 0x2000, scoped, tag = 'input window, operand 0, single buffered']
    #allocation3 [shape = 's32[1]{0}', space=sflag, size = 0x4, scoped, tag = 'scoped memory for tpu_custom_call.1']
    #allocation4 [shape = 's32[1]{0}', space=sflag, size = 0x4, scoped, tag = 'scoped memory for tpu_custom_call.1']
    #allocation5 [shape = 'u8[8192]{0}', space=vmem, size = 0x2000, scoped, tag = 'input window, operand 1, single buffered']
    #allocation6 [shape = 's32[1]{0}', space=sflag, size = 0x4, scoped, tag = 'scoped memory for tpu_custom_call.1']
    #allocation7 [shape = 'u8[8192]{0}', space=vmem, size = 0x2000, scoped, tag = 'output window, operand 0, single buffered']
    %9 = vsyncpa [#allocation3], 0
    %10 = vsyncpa [#allocation6], 0
    %11 = vsyncpa [#allocation4], 0
    // Predicated region
    $region2: #{tpu_custom_call.1} parent=1 // pred_check
      _
    $region3: #{tpu_custom_call.1} parent=1 // pred_check_branch
      %13 = sbr.rel (0) target = $region5
    $region4: #{tpu_custom_call.1} parent=1 // pred_region
      %s15 = ssub.s32 256, 256
      %16 = vsyncadd [#allocation3], %s15
      %s17 = sshll.u32 [#allocation2], 4
      %s18 = int_to_ptr.vmem [resolvable:$true] %s17
      %23 = dma.hbm_to_vmem [thread:$0]  %s0, 256, %s18, [#allocation3], 128, 128, 8
    $region5: #{tpu_custom_call.1} parent=1 // pred_fallthru
      _
    // Predicated region
    $region6: #{tpu_custom_call.1} parent=1 // pred_check
      _
    $region7: #{tpu_custom_call.1} parent=1 // pred_check_branch
      %25 = sbr.rel (0) target = $region9
    $region8: #{tpu_custom_call.1} parent=1 // pred_region
      %s27 = ssub.s32 256, 256
      %28 = vsyncadd [#allocation6], %s27
      %s29 = sshll.u32 [#allocation5], 4
      %s30 = int_to_ptr.vmem [resolvable:$true] %s29
      %35 = dma.hbm_to_vmem [thread:$0]  %s1, 256, %s30, [#allocation6], 128, 128, 8
    $region9: #{tpu_custom_call.1} parent=1 // pred_fallthru
      _
    // Predicated region
    $region10: #{tpu_custom_call.1} parent=1 // pred_check
      _
    $region11: #{tpu_custom_call.1} parent=1 // pred_check_branch
      %37 = sbr.rel (0) target = $region13
    $region12: #{tpu_custom_call.1} parent=1 // pred_region
      _
    $region13: #{tpu_custom_call.1} parent=1 // pred_fallthru
      _
    // Predicated region
    $region14: #{tpu_custom_call.1} parent=1 // pred_check
      _
    $region15: #{tpu_custom_call.1} parent=1 // pred_check_branch
      %39 = sbr.rel (0) target = $region17
    $region16: #{tpu_custom_call.1} parent=1 // pred_region
      _
    $region17: #{tpu_custom_call.1} parent=1 // pred_fallthru
      _
    // Predicated region
    $region18: #{tpu_custom_call.1} parent=1 // pred_check
      _
    $region19: #{tpu_custom_call.1} parent=1 // pred_check_branch
      %41 = sbr.rel (0) target = $region21
    $region20: #{tpu_custom_call.1} parent=1 // pred_region
      %42 = dma.done [#allocation3], 256
    $region21: #{tpu_custom_call.1} parent=1 // pred_fallthru
      _
    // Predicated region
    $region22: #{tpu_custom_call.1} parent=1 // pred_check
      _
    $region23: #{tpu_custom_call.1} parent=1 // pred_check_branch
      %44 = sbr.rel (0) target = $region25
    $region24: #{tpu_custom_call.1} parent=1 // pred_region
      %45 = dma.done [#allocation6], 256
    $region25: #{tpu_custom_call.1} parent=1 // pred_fallthru
      _
    %v46 = vld [vmem:[#allocation5] sm:$0xff]
    %v47 = vld [vmem:[#allocation5 + $0x8] sm:$0xff]
    %v48 = vld [vmem:[#allocation2] sm:$0xff]
    %v49 = vld [vmem:[#allocation2 + $0x8] sm:$0xff]
    %v50 = vadd.f32 %v46, %v48
    %v51 = vadd.f32 %v47, %v49
    %v52 = vld [vmem:[%s2] sm:$0x1]
    %v53 = vld [vmem:[%s3] sm:$0x1]
    %vm54 = vcmask 261120
    %v55 = vsel %vm54, %v50, 0.0
    %56 = vadd.xlane.f32.xlu0 %v55
    %v57 = vpop.xlane.xlu0 %56
    %v58 = vsel %vm54, %v51, 0.0
    %59 = vadd.xlane.f32.xlu0 %v58
    %v60 = vpop.xlane.xlu0 %59
    %v61 = vrcp.pop 32.0
    %v62 = vmul.f32 %v57, %v61
    %v63 = vmul.f32 %v60, %v61
    %v64 = vsub.f32 %v50, %v62
    %v65 = vsub.f32 %v51, %v63
    %v66 = vmul.f32 %v64, %v64
    %v67 = vmul.f32 %v65, %v65
    %v68 = vsel %vm54, %v66, 0.0
    %69 = vadd.xlane.f32.xlu0 %v68
    %v70 = vpop.xlane.xlu0 %69
    %v71 = vsel %vm54, %v67, 0.0
    %72 = vadd.xlane.f32.xlu0 %v71
    %v73 = vpop.xlane.xlu0 %72
    %v74 = vmul.f32 %v70, %v61
    %v75 = vmul.f32 %v73, %v61
    %v76 = vadd.f32 %v74, 1e-05
    %v77 = vadd.f32 %v75, 1e-05
    %v78 = vrsqrt.pop %v76
    %v79 = vrsqrt.pop %v77
    %v80 = vmul.f32 %v64, %v78
    %v81 = vmul.f32 %v65, %v79
    %v83 = vlaneseq
    %v84 = vshrl.u32 %v83, 7
    %v85 = vsub.s32 0, %v84
    %v86 = vrot.slane %v52, %v85
    %v88 = vmul.f32 %v80, %v86
    %v89 = vmul.f32 %v81, %v86
    %v91 = vlaneseq
    %v92 = vshrl.u32 %v91, 7
    %v93 = vsub.s32 0, %v92
    %v94 = vrot.slane %v53, %v93
    %v96 = vadd.f32 %v88, %v94
    %v97 = vadd.f32 %v89, %v94
    %98 = vst.msk [vmem:[#allocation7] sm:$0xff] %vm54, %v96
    %99 = vst.msk [vmem:[#allocation7 + $0x8] sm:$0xff] %vm54, %v97
    // Predicated region
    $region26: #{tpu_custom_call.1} parent=1 // pred_check
      _
    $region27: #{tpu_custom_call.1} parent=1 // pred_check_branch
      %101 = sbr.rel (0) target = $region29
    $region28: #{tpu_custom_call.1} parent=1 // pred_region
      %s103 = ssub.s32 256, 256
      %104 = vsyncadd [#allocation4], %s103
      %s105 = sshll.u32 [#allocation7], 4
      %s106 = int_to_ptr.vmem [resolvable:$true] %s105
      %111 = dma.vmem_to_hbm [thread:$0]  %s106, 256, %s4, [#allocation4], 128, 128, 8
    $region29: #{tpu_custom_call.1} parent=1 // pred_fallthru
      _
    // Predicated region
    $region30: #{tpu_custom_call.1} parent=1 // pred_check
      _
    $region31: #{tpu_custom_call.1} parent=1 // pred_check_branch
      %113 = sbr.rel (0) target = $region33
    $region32: #{tpu_custom_call.1} parent=1 // pred_region
      %114 = dma.done [#allocation4], 256
    $region33: #{tpu_custom_call.1} parent=1 // pred_fallthru
      _
    %115 = vsyncpa [#allocation3], 1
    %116 = vsyncpa [#allocation6], 1
    %117 = vsyncpa [#allocation4], 1

</llo_original>
